<compile_context>
chip_gen: v7x
topology: tpu7x:2x2x1
jax: 0.10.0
libtpu: 0.0.40
codegen_flags: <defaults>
</compile_context>

<pallas_src>
import math

import jax
import jax.numpy as jnp
from jax.experimental import pallas as pl
from jax.experimental.pallas import tpu as pltpu


def _chain_segsum_kernel(z_ref, s_ref, o_ref):
    """tanh -> sin -> tanh on a lane-dense tile, then per-batch-row segmented
    sum (x2 from the folded cat((y, y))) via a matmul on the idle MXU."""
    v = z_ref[...].astype(jnp.float32)      # (tile_r, W), fully lane-dense
    v = jnp.tanh(v)                         # EUP
    v = jnp.sin(v)                          # EUP / VPU
    v = jnp.tanh(v)                         # EUP
    # s_ref is a constant 0/2 selection matrix: out[r, g] = 2 * sum_f v[r, g*F+f]
    o_ref[...] = jnp.dot(
        v, s_ref[...], preferred_element_type=jnp.float32
    ).astype(o_ref.dtype)


def model_forward(x, *, max_tile_rows=2048):
    """Pallas TPU implementation of Model.forward; x: (B, 3, 4) -> (B, 1)."""
    B = x.shape[0]
    F = math.prod(x.shape[1:])              # 12 for the (B, 3, 4) spec
    P = 128 // math.gcd(F, 128)             # batch rows packed per kernel row (32)
    W = P * F                               # lane width, multiple of 128 (384)

    flat = x.reshape(-1)                    # free contiguous view: b-major, f-minor
    R = max(-(-B // P), 8)                  # kernel rows; >= 8 keeps MXU M-dim sane
    pad = R * W - B * F
    if pad:
        flat = jnp.pad(flat, (0, pad))      # zeros: chain(0)=0, rows sliced off below
    z = flat.reshape(R, W)                  # (R, 384): lane-dense, still a free view

    # Constant segmented-sum matrix; the x2 from cat((y, y), dim=1) is folded in.
    s = jnp.where(
        jnp.arange(W)[:, None] // F == jnp.arange(P)[None, :], 2.0, 0.0
    ).astype(jnp.float32)                   # (384, 32) ~ 48 KiB, stays resident

    # Tile picking: as large as useful (amortize ~0.35 us/step), multiple of 8,
    # and >= 4 grid steps when possible so v7x's 2 TensorCores share the rows.
    if R <= 32:
        tile_r = R                          # tiny batch: one full-extent block
    else:
        tile_r = max(8, (min(max_tile_rows, R // 4) // 8) * 8)
    grid = (pl.cdiv(R, tile_r),)            # ragged last block OK: rows independent

    out = pl.pallas_call(
        _chain_segsum_kernel,
        out_shape=jax.ShapeDtypeStruct((R, P), x.dtype),
        grid=grid,
        in_specs=[
            pl.BlockSpec((tile_r, W), lambda i: (i, 0)),   # data tile (double-buffered)
            pl.BlockSpec((W, P), lambda i: (0, 0)),        # constant, block index fixed
        ],
        out_specs=pl.BlockSpec((tile_r, P), lambda i: (i, 0)),  # lane-dense output slab
        compiler_params=pltpu.CompilerParams(
            dimension_semantics=("parallel",)),
        cost_estimate=pl.CostEstimate(
            flops=2 * R * W * P,
            transcendentals=3 * R * W,
            bytes_accessed=4 * (R * W + W * P + R * P)),
    )(z, s)

    # (R, P) -> flat batch order -> drop padding -> (B, 1); all free views.
    return out.reshape(-1)[:B].reshape(B, 1)


def model_forward_ref(x):
    B = x.shape[0]
    y = x.reshape(B, -1)
    y = jnp.concatenate([y, y], axis=1)
    return jnp.sum(jnp.tanh(jnp.sin(jnp.tanh(y))), axis=1, keepdims=True)


if __name__ == "__main__":
    # Spec-sized input (matches the torch module): (2, 3, 4).
    x = jax.random.normal(jax.random.PRNGKey(0), (2, 3, 4), dtype=jnp.float32)
    out = jax.block_until_ready(model_forward(x))
    ref = model_forward_ref(x)
    assert out.shape == (2, 1), out.shape
    assert jnp.allclose(out, ref, atol=1e-4, rtol=1e-4), (out, ref)

    # Exercise the tiled grid path, a ragged last block, and the pad/slice logic.
    xb = jax.random.normal(jax.random.PRNGKey(0), (2053, 3, 4), dtype=jnp.float32)
    outb = jax.block_until_ready(model_forward(xb))
    refb = model_forward_ref(xb)
    assert outb.shape == (2053, 1), outb.shape
    assert jnp.allclose(outb, refb, atol=1e-4, rtol=1e-4)

    print("KERNEL_OK")
</pallas_src>

<mosaic_0001>
module attributes {stable_mosaic.version = 11 : i64} {
  func.func @_chain_segsum_kernel(%arg0: i32, %arg1: memref<8x384xf32, #tpu.memory_space<vmem>>, %arg2: memref<384x32xf32, #tpu.memory_space<vmem>>, %arg3: memref<8x32xf32, #tpu.memory_space<vmem>>) attributes {dimension_semantics = [#tpu.dimension_semantics<parallel>], iteration_bounds = array<i64: 1>, scalar_prefetch = 0 : i64, scratch_operands = 0 : i64, tpu.core_type = #tpu.core_type<tc>, window_params = [{transform_indices = @transform_0, window_bounds = array<i64: 8, 384>}, {pipeline_mode = #tpu.pipeline_mode<synchronous>, transform_indices = @transform_1, window_bounds = array<i64: 384, 32>}, {transform_indices = @transform_2, window_bounds = array<i64: 8, 32>}]} {
    %c0 = arith.constant 0 : index
    %c0_0 = arith.constant 0 : index
    %0 = vector.load %arg1[%c0, %c0_0] : memref<8x384xf32, #tpu.memory_space<vmem>>, vector<8x384xf32>
    %1 = math.tanh %0 : vector<8x384xf32>
    %2 = math.sin %1 : vector<8x384xf32>
    %3 = math.tanh %2 : vector<8x384xf32>
    %c0_1 = arith.constant 0 : index
    %c0_2 = arith.constant 0 : index
    %4 = vector.load %arg2[%c0_1, %c0_2] : memref<384x32xf32, #tpu.memory_space<vmem>>, vector<384x32xf32>
    %cst = arith.constant dense<0.000000e+00> : vector<8x32xf32>
    %5 = tpu.matmul %3, %4, %cst {dimension_numbers = #tpu.dot_dimension_numbers<[1], [0], [0], [1], [0, 0, 1, 1], [], []>} : vector<8x384xf32>, vector<384x32xf32>, vector<8x32xf32> -> vector<8x32xf32>
    %c0_3 = arith.constant 0 : index
    %c0_4 = arith.constant 0 : index
    %6 = vector.load %arg3[%c0_3, %c0_4] : memref<8x32xf32, #tpu.memory_space<vmem>>, vector<8x32xf32>
    tpu.vector_store %arg3[%c0_3, %c0_4], %5 {strides = array<i32>} : memref<8x32xf32, #tpu.memory_space<vmem>>, vector<8x32xf32>,
    return
  }
  func.func @transform_0(%arg0: i32) -> (i32, i32) {
    %c0_i32 = arith.constant 0 : i32
    %c0_i32_0 = arith.constant 0 : i32
    return %arg0, %c0_i32 : i32, i32
  }
  func.func @transform_1(%arg0: i32) -> (i32, i32) {
    %c0_i32 = arith.constant 0 : i32
    %c0_i32_0 = arith.constant 0 : i32
    %c0_i32_1 = arith.constant 0 : i32
    return %c0_i32, %c0_i32_0 : i32, i32
  }
  func.func @transform_2(%arg0: i32) -> (i32, i32) {
    %c0_i32 = arith.constant 0 : i32
    %c0_i32_0 = arith.constant 0 : i32
    return %arg0, %c0_i32 : i32, i32
  }
}

</mosaic_0001>

<llo_original>
// kernel: tpu_custom_call.1
$region0: #{tpu_custom_call.1}
  #allocation0 [shape = 'u32[]', space=smem, size = 0x4, offset = 0x4, fixed_abs, tag = 'smem constant byte address 0x4 - core index']
  #allocation1 [shape = 'u32[144,128]{1,0:T(1,128)}', space=vmem, size = 0x12000, scoped, tag = 'internal scratch']
  %s0 = inlined_call_operand.vmem [shape: f32[8,384], index: 0, kind: input, shape index: {}]
  %s1 = inlined_call_operand.vmem [shape: f32[384,32], index: 1, kind: input, shape index: {}]
  %s2 = inlined_call_operand.hbm [shape: f32[8,32], index: 2, kind: output, shape index: {}]
  %s3 = sld [smem:[#allocation0]]
  $region18: #{tpu_custom_call.1} parent=0
    _
  %s5 = ssub.s32 1, %s3
  %s6 = scalar_select 0, %s5, %s3
  $region1: #{tpu_custom_call.1} parent=0
    #allocation2 [shape = 'u8[4096]{0}', space=vmem, size = 0x1000, scoped, tag = 'output window, operand 0, single buffered']
    #allocation3 [shape = 's32[1]{0}', space=sflag, size = 0x4, scoped, tag = 'scoped memory for tpu_custom_call.1']
    %7 = vsyncpa [#allocation3], 0
    // Predicated region
    $region2: #{tpu_custom_call.1} parent=1 // pred_check
      _
    $region3: #{tpu_custom_call.1} parent=1 // pred_check_branch
      %9 = sbr.rel (0) target = $region5
    $region4: #{tpu_custom_call.1} parent=1 // pred_region
      _
    $region5: #{tpu_custom_call.1} parent=1 // pred_fallthru
      _
    // Predicated region
    $region6: #{tpu_custom_call.1} parent=1 // pred_check
      _
    $region7: #{tpu_custom_call.1} parent=1 // pred_check_branch
      %11 = sbr.rel (0) target = $region9
    $region8: #{tpu_custom_call.1} parent=1 // pred_region
      _
    $region9: #{tpu_custom_call.1} parent=1 // pred_fallthru
      _
    %v12 = vld [vmem:[%s0] sm:$0xff]
    %v13 = vld [vmem:[%s0 + $0x8] sm:$0xff]
    %v14 = vld [vmem:[%s0 + $0x10] sm:$0xff]
    %v15 = vtanh.pop %v12
    %v16 = vtanh.pop %v13
    %v17 = vtanh.pop %v14
    %v18 = vand.u32 2147483647, %v15
    %vm19 = vcmp.le.f32.partialorder %v18, 0.7853982
    %vm20 = vcmp.lt.s32.totalorder %v15, 0
    %v21 = vand.u32 %v15, 2139095040
    %v22 = vshrl.u32 %v21, 23
    %v23 = vsub.s32 %v22, 127
    %v24 = vand.u32 2147483647, %v15
    %v25 = vand.u32 %v24, 8388607
    %v26 = vor.u32 %v25, 8388608
    %v27 = vsub.s32 0, %v26
    %v28 = vadd.s32 %v23, 1
    %vm29 = vcmp.gt.s32.totalorder %v28, 0
    %v30 = vsel %vm29, %v28, 0
    %v31 = vshrl.u32 %v30, 5
    %v32 = vand.u32 %v30, 31
    %v33 = vsub.s32 32, %v32
    %v34 = vshrl.u32 683565275, %v33
    %v35 = vshll.u32 683565275, %v32
    %v36 = vshrl.u32 2475754826, %v33
    %v37 = vor.u32 %v35, %v36
    %v38 = vshll.u32 2475754826, %v32
    %v39 = vshrl.u32 2131351028, %v33
    %v40 = vor.u32 %v38, %v39
    %v41 = vshll.u32 2131351028, %v32
    %v42 = vshrl.u32 2102212464, %v33
    %v43 = vor.u32 %v41, %v42
    %v44 = vshll.u32 2102212464, %v32
    %v45 = vshrl.u32 920167782, %v33
    %v46 = vor.u32 %v44, %v45
    %v47 = vshll.u32 920167782, %v32
    %v48 = vshrl.u32 1326507024, %v33
    %v49 = vor.u32 %v47, %v48
    %vm50 = vcmp.lt.s32.totalorder %v31, 1
    %vm51 = vcmp.lt.s32.totalorder %v31, 2
    %vm52 = vcmp.lt.s32.totalorder %v31, 3
    %vm53 = vcmp.lt.s32.totalorder %v31, 4
    %v54 = vsel %vm50, %v34, %v37
    %v55 = vsel %vm53, %v43, 2102212464
    %v56 = vsel %vm52, %v40, %v55
    %v57 = vsel %vm51, %v54, %v56
    %v58 = vsel %vm50, %v37, %v40
    %v59 = vsel %vm53, %v46, 920167782
    %v60 = vsel %vm52, %v43, %v59
    %v61 = vsel %vm51, %v58, %v60
    %v62 = vsel %vm50, %v40, %v43
    %v63 = vsel %vm53, %v49, 1326507024
    %v64 = vsel %vm52, %v46, %v63
    %v65 = vsel %vm51, %v62, %v64
    %v66 = vshll.u32 %v26, 8
    %v67 = vmul.u32.u64.compose %v66, %v65
    %v68 = vextract.low.u32 %v67
    %v69 = vextract.high.u32 %v67
    %v70 = vmul.u32.u64.compose %v66, %v61
    %v71 = vextract.low.u32 %v70
    %v72 = vextract.high.u32 %v70
    %v73 = vmul.u32 %v66, %v57
    %v74 = vadd.s32 %v69, %v71
    %vm75 = vc.u32 %v69, %v71
    %v76 = vadd.s32 %v72, 1
    %v77 = vsel %vm75, %v76, %v72
    %v78 = vadd.s32 %v73, %v77
    %v79 = vadd.s32 %v78, 536870912
    %v80 = vshrl.u32 %v79, 30
    %v81 = vshll.u32 %v80, 30
    %v82 = vsub.s32 %v78, %v81
    %vm83 = vcmp.lt.s32.totalorder %v82, 0
    %v84 = vsub.s32 0, %v82
    %v85 = vsel %vm83, %v84, %v82
    %v86 = vclz %v85
    %v87 = vsub.s32 %v86, 2
    %vm88 = vcmp.gt.s32.totalorder 0, %v87
    %v89 = vsel %vm88, 0, %v87
    %v90 = vsub.s32 32, %v89
    %v91 = vshll.u32 %v82, %v89
    %v92 = vshrl.u32 %v74, %v90
    %v93 = vor.u32 %v91, %v92
    %v94 = vsub.s32 4294967266, %v89
    %v95 = vadd.s32 %v94, 127
    %v96 = vshll.u32 %v95, 23
    %v97 = vor.u32 4788187, %v96
    %v98 = vand.u32 2147483647, %v97
    %v100 = vcvt.s32.f32 %v93
    %v101 = vmul.f32 %v100, %v98
    %v102 = vxor.u32 %v101, 2147483648
    %v103 = vsel %vm20, %v102, %v101
    %v104 = vsub.s32 4, %v80
    %v105 = vsel %vm20, %v104, %v80
    %v106 = vsel %vm19, %v15, %v103
    %v107 = vsel %vm19, 0, %v105
    %v108 = vcosq.f32.pop %v106
    %v109 = vsinq.f32.pop %v106
    %vm110 = vweird.f32 %v15
    %v111 = vadd.s32 %v107, 3
    %v112 = vand.u32 %v111, 3
    %vm113 = vcmp.lt.s32.totalorder %v112, 2
    %vm114 = vcmp.eq.s32.totalorder %v112, 0
    %v115 = vxor.u32 %v109, 2147483648
    %v116 = vsel %vm114, %v108, %v115
    %vm117 = vcmp.eq.s32.totalorder %v112, 2
    %v118 = vxor.u32 %v108, 2147483648
    %v119 = vsel %vm117, %v118, %v109
    %v120 = vsel %vm113, %v116, %v119
    %v121 = vsel %vm110, nan, %v120
    %v122 = vand.u32 2147483647, %v16
    %vm123 = vcmp.le.f32.partialorder %v122, 0.7853982
    %vm124 = vcmp.lt.s32.totalorder %v16, 0
    %v125 = vand.u32 %v16, 2139095040
    %v126 = vshrl.u32 %v125, 23
    %v127 = vsub.s32 %v126, 127
    %v128 = vand.u32 2147483647, %v16
    %v129 = vand.u32 %v128, 8388607
    %v130 = vor.u32 %v129, 8388608
    %v131 = vsub.s32 0, %v130
    %v132 = vadd.s32 %v127, 1
    %vm133 = vcmp.gt.s32.totalorder %v132, 0
    %v134 = vsel %vm133, %v132, 0
    %v135 = vshrl.u32 %v134, 5
    %v136 = vand.u32 %v134, 31
    %v137 = vsub.s32 32, %v136
    %v138 = vshrl.u32 683565275, %v137
    %v139 = vshll.u32 683565275, %v136
    %v140 = vshrl.u32 2475754826, %v137
    %v141 = vor.u32 %v139, %v140
    %v142 = vshll.u32 2475754826, %v136
    %v143 = vshrl.u32 2131351028, %v137
    %v144 = vor.u32 %v142, %v143
    %v145 = vshll.u32 2131351028, %v136
    %v146 = vshrl.u32 2102212464, %v137
    %v147 = vor.u32 %v145, %v146
    %v148 = vshll.u32 2102212464, %v136
    %v149 = vshrl.u32 920167782, %v137
    %v150 = vor.u32 %v148, %v149
    %v151 = vshll.u32 920167782, %v136
    %v152 = vshrl.u32 1326507024, %v137
    %v153 = vor.u32 %v151, %v152
    %vm154 = vcmp.lt.s32.totalorder %v135, 1
    %vm155 = vcmp.lt.s32.totalorder %v135, 2
    %vm156 = vcmp.lt.s32.totalorder %v135, 3
    %vm157 = vcmp.lt.s32.totalorder %v135, 4
    %v158 = vsel %vm154, %v138, %v141
    %v159 = vsel %vm157, %v147, 2102212464
    %v160 = vsel %vm156, %v144, %v159
    %v161 = vsel %vm155, %v158, %v160
    %v162 = vsel %vm154, %v141, %v144
    %v163 = vsel %vm157, %v150, 920167782
    %v164 = vsel %vm156, %v147, %v163
    %v165 = vsel %vm155, %v162, %v164
    %v166 = vsel %vm154, %v144, %v147
    %v167 = vsel %vm157, %v153, 1326507024
    %v168 = vsel %vm156, %v150, %v167
    %v169 = vsel %vm155, %v166, %v168
    %v170 = vshll.u32 %v130, 8
    %v171 = vmul.u32.u64.compose %v170, %v169
    %v172 = vextract.low.u32 %v171
    %v173 = vextract.high.u32 %v171
    %v174 = vmul.u32.u64.compose %v170, %v165
    %v175 = vextract.low.u32 %v174
    %v176 = vextract.high.u32 %v174
    %v177 = vmul.u32 %v170, %v161
    %v178 = vadd.s32 %v173, %v175
    %vm179 = vc.u32 %v173, %v175
    %v180 = vadd.s32 %v176, 1
    %v181 = vsel %vm179, %v180, %v176
    %v182 = vadd.s32 %v177, %v181
    %v183 = vadd.s32 %v182, 536870912
    %v184 = vshrl.u32 %v183, 30
    %v185 = vshll.u32 %v184, 30
    %v186 = vsub.s32 %v182, %v185
    %vm187 = vcmp.lt.s32.totalorder %v186, 0
    %v188 = vsub.s32 0, %v186
    %v189 = vsel %vm187, %v188, %v186
    %v190 = vclz %v189
    %v191 = vsub.s32 %v190, 2
    %vm192 = vcmp.gt.s32.totalorder 0, %v191
    %v193 = vsel %vm192, 0, %v191
    %v194 = vsub.s32 32, %v193
    %v195 = vshll.u32 %v186, %v193
    %v196 = vshrl.u32 %v178, %v194
    %v197 = vor.u32 %v195, %v196
    %v198 = vsub.s32 4294967266, %v193
    %v199 = vadd.s32 %v198, 127
    %v200 = vshll.u32 %v199, 23
    %v201 = vor.u32 4788187, %v200
    %v202 = vand.u32 2147483647, %v201
    %v204 = vcvt.s32.f32 %v197
    %v205 = vmul.f32 %v204, %v202
    %v206 = vxor.u32 %v205, 2147483648
    %v207 = vsel %vm124, %v206, %v205
    %v208 = vsub.s32 4, %v184
    %v209 = vsel %vm124, %v208, %v184
    %v210 = vsel %vm123, %v16, %v207
    %v211 = vsel %vm123, 0, %v209
    %v212 = vcosq.f32.pop %v210
    %v213 = vsinq.f32.pop %v210
    %vm214 = vweird.f32 %v16
    %v215 = vadd.s32 %v211, 3
    %v216 = vand.u32 %v215, 3
    %vm217 = vcmp.lt.s32.totalorder %v216, 2
    %vm218 = vcmp.eq.s32.totalorder %v216, 0
    %v219 = vxor.u32 %v213, 2147483648
    %v220 = vsel %vm218, %v212, %v219
    %vm221 = vcmp.eq.s32.totalorder %v216, 2
    %v222 = vxor.u32 %v212, 2147483648
    %v223 = vsel %vm221, %v222, %v213
    %v224 = vsel %vm217, %v220, %v223
    %v225 = vsel %vm214, nan, %v224
    %v226 = vand.u32 2147483647, %v17
    %vm227 = vcmp.le.f32.partialorder %v226, 0.7853982
    %vm228 = vcmp.lt.s32.totalorder %v17, 0
    %v229 = vand.u32 %v17, 2139095040
    %v230 = vshrl.u32 %v229, 23
    %v231 = vsub.s32 %v230, 127
    %v232 = vand.u32 2147483647, %v17
    %v233 = vand.u32 %v232, 8388607
    %v234 = vor.u32 %v233, 8388608
    %v235 = vsub.s32 0, %v234
    %v236 = vadd.s32 %v231, 1
    %vm237 = vcmp.gt.s32.totalorder %v236, 0
    %v238 = vsel %vm237, %v236, 0
    %v239 = vshrl.u32 %v238, 5
    %v240 = vand.u32 %v238, 31
    %v241 = vsub.s32 32, %v240
    %v242 = vshrl.u32 683565275, %v241
    %v243 = vshll.u32 683565275, %v240
    %v244 = vshrl.u32 2475754826, %v241
    %v245 = vor.u32 %v243, %v244
    %v246 = vshll.u32 2475754826, %v240
    %v247 = vshrl.u32 2131351028, %v241
    %v248 = vor.u32 %v246, %v247
    %v249 = vshll.u32 2131351028, %v240
    %v250 = vshrl.u32 2102212464, %v241
    %v251 = vor.u32 %v249, %v250
    %v252 = vshll.u32 2102212464, %v240
    %v253 = vshrl.u32 920167782, %v241
    %v254 = vor.u32 %v252, %v253
    %v255 = vshll.u32 920167782, %v240
    %v256 = vshrl.u32 1326507024, %v241
    %v257 = vor.u32 %v255, %v256
    %vm258 = vcmp.lt.s32.totalorder %v239, 1
    %vm259 = vcmp.lt.s32.totalorder %v239, 2
    %vm260 = vcmp.lt.s32.totalorder %v239, 3
    %vm261 = vcmp.lt.s32.totalorder %v239, 4
    %v262 = vsel %vm258, %v242, %v245
    %v263 = vsel %vm261, %v251, 2102212464
    %v264 = vsel %vm260, %v248, %v263
    %v265 = vsel %vm259, %v262, %v264
    %v266 = vsel %vm258, %v245, %v248
    %v267 = vsel %vm261, %v254, 920167782
    %v268 = vsel %vm260, %v251, %v267
    %v269 = vsel %vm259, %v266, %v268
    %v270 = vsel %vm258, %v248, %v251
    %v271 = vsel %vm261, %v257, 1326507024
    %v272 = vsel %vm260, %v254, %v271
    %v273 = vsel %vm259, %v270, %v272
    %v274 = vshll.u32 %v234, 8
    %v275 = vmul.u32.u64.compose %v274, %v273
    %v276 = vextract.low.u32 %v275
    %v277 = vextract.high.u32 %v275
    %v278 = vmul.u32.u64.compose %v274, %v269
    %v279 = vextract.low.u32 %v278
    %v280 = vextract.high.u32 %v278
    %v281 = vmul.u32 %v274, %v265
    %v282 = vadd.s32 %v277, %v279
    %vm283 = vc.u32 %v277, %v279
    %v284 = vadd.s32 %v280, 1
    %v285 = vsel %vm283, %v284, %v280
    %v286 = vadd.s32 %v281, %v285
    %v287 = vadd.s32 %v286, 536870912
    %v288 = vshrl.u32 %v287, 30
    %v289 = vshll.u32 %v288, 30
    %v290 = vsub.s32 %v286, %v289
    %vm291 = vcmp.lt.s32.totalorder %v290, 0
    %v292 = vsub.s32 0, %v290
    %v293 = vsel %vm291, %v292, %v290
    %v294 = vclz %v293
    %v295 = vsub.s32 %v294, 2
    %vm296 = vcmp.gt.s32.totalorder 0, %v295
    %v297 = vsel %vm296, 0, %v295
    %v298 = vsub.s32 32, %v297
    %v299 = vshll.u32 %v290, %v297
    %v300 = vshrl.u32 %v282, %v298
    %v301 = vor.u32 %v299, %v300
    %v302 = vsub.s32 4294967266, %v297
    %v303 = vadd.s32 %v302, 127
    %v304 = vshll.u32 %v303, 23
    %v305 = vor.u32 4788187, %v304
    %v306 = vand.u32 2147483647, %v305
    %v308 = vcvt.s32.f32 %v301
    %v309 = vmul.f32 %v308, %v306
    %v310 = vxor.u32 %v309, 2147483648
    %v311 = vsel %vm228, %v310, %v309
    %v312 = vsub.s32 4, %v288
    %v313 = vsel %vm228, %v312, %v288
    %v314 = vsel %vm227, %v17, %v311
    %v315 = vsel %vm227, 0, %v313
    %v316 = vcosq.f32.pop %v314
    %v317 = vsinq.f32.pop %v314
    %vm318 = vweird.f32 %v17
    %v319 = vadd.s32 %v315, 3
    %v320 = vand.u32 %v319, 3
    %vm321 = vcmp.lt.s32.totalorder %v320, 2
    %vm322 = vcmp.eq.s32.totalorder %v320, 0
    %v323 = vxor.u32 %v317, 2147483648
    %v324 = vsel %vm322, %v316, %v323
    %vm325 = vcmp.eq.s32.totalorder %v320, 2
    %v326 = vxor.u32 %v316, 2147483648
    %v327 = vsel %vm325, %v326, %v317
    %v328 = vsel %vm321, %v324, %v327
    %v329 = vsel %vm318, nan, %v328
    %v330 = vtanh.pop %v121
    %v331 = vtanh.pop %v225
    %v332 = vtanh.pop %v329
    %v333 = vld [vmem:[%s1] sm:$0xff]
    %v334 = vld [vmem:[%s1 + $0x8] sm:$0xff]
    %v335 = vld [vmem:[%s1 + $0x10] sm:$0xff]
    %v336 = vld [vmem:[%s1 + $0x18] sm:$0xff]
    %v337 = vld [vmem:[%s1 + $0x20] sm:$0xff]
    %v338 = vld [vmem:[%s1 + $0x28] sm:$0xff]
    %v339 = vld [vmem:[%s1 + $0x30] sm:$0xff]
    %v340 = vld [vmem:[%s1 + $0x38] sm:$0xff]
    %v341 = vld [vmem:[%s1 + $0x40] sm:$0xff]
    %v342 = vld [vmem:[%s1 + $0x48] sm:$0xff]
    %v343 = vld [vmem:[%s1 + $0x50] sm:$0xff]
    %v344 = vld [vmem:[%s1 + $0x58] sm:$0xff]
    %v345 = vld [vmem:[%s1 + $0x60] sm:$0xff]
    %v346 = vld [vmem:[%s1 + $0x68] sm:$0xff]
    %v347 = vld [vmem:[%s1 + $0x70] sm:$0xff]
    %v348 = vld [vmem:[%s1 + $0x78] sm:$0xff]
    %v349 = vld [vmem:[%s1 + $0x80] sm:$0xff]
    %v350 = vld [vmem:[%s1 + $0x88] sm:$0xff]
    %v351 = vld [vmem:[%s1 + $0x90] sm:$0xff]
    %v352 = vld [vmem:[%s1 + $0x98] sm:$0xff]
    %v353 = vld [vmem:[%s1 + $0xa0] sm:$0xff]
    %v354 = vld [vmem:[%s1 + $0xa8] sm:$0xff]
    %v355 = vld [vmem:[%s1 + $0xb0] sm:$0xff]
    %v356 = vld [vmem:[%s1 + $0xb8] sm:$0xff]
    %v357 = vld [vmem:[%s1 + $0xc0] sm:$0xff]
    %v358 = vld [vmem:[%s1 + $0xc8] sm:$0xff]
    %v359 = vld [vmem:[%s1 + $0xd0] sm:$0xff]
    %v360 = vld [vmem:[%s1 + $0xd8] sm:$0xff]
    %v361 = vld [vmem:[%s1 + $0xe0] sm:$0xff]
    %v362 = vld [vmem:[%s1 + $0xe8] sm:$0xff]
    %v363 = vld [vmem:[%s1 + $0xf0] sm:$0xff]
    %v364 = vld [vmem:[%s1 + $0xf8] sm:$0xff]
    %v365 = vld [vmem:[%s1 + $0x100] sm:$0xff]
    %v366 = vld [vmem:[%s1 + $0x108] sm:$0xff]
    %v367 = vld [vmem:[%s1 + $0x110] sm:$0xff]
    %v368 = vld [vmem:[%s1 + $0x118] sm:$0xff]
    %v369 = vld [vmem:[%s1 + $0x120] sm:$0xff]
    %v370 = vld [vmem:[%s1 + $0x128] sm:$0xff]
    %v371 = vld [vmem:[%s1 + $0x130] sm:$0xff]
    %v372 = vld [vmem:[%s1 + $0x138] sm:$0xff]
    %v373 = vld [vmem:[%s1 + $0x140] sm:$0xff]
    %v374 = vld [vmem:[%s1 + $0x148] sm:$0xff]
    %v375 = vld [vmem:[%s1 + $0x150] sm:$0xff]
    %v376 = vld [vmem:[%s1 + $0x158] sm:$0xff]
    %v377 = vld [vmem:[%s1 + $0x160] sm:$0xff]
    %v378 = vld [vmem:[%s1 + $0x168] sm:$0xff]
    %v379 = vld [vmem:[%s1 + $0x170] sm:$0xff]
    %v380 = vld [vmem:[%s1 + $0x178] sm:$0xff]
    %381 = vmatprep.subr.mxu0 0.0
    %382 = vmatpush1.msra.mxu0 %v333
    %383 = vmatprep.subr.mxu0 0.0
    %384 = vmatpush1.msra.mxu0 %v334
    %385 = vmatprep.subr.mxu0 0.0
    %386 = vmatpush1.msra.mxu0 %v335
    %387 = vmatprep.subr.mxu0 0.0
    %388 = vmatpush1.msra.mxu0 %v336
    %389 = vmatprep.subr.mxu0 0.0
    %390 = vmatpush1.msra.mxu0 %v337
    %391 = vmatprep.subr.mxu0 0.0
    %392 = vmatpush1.msra.mxu0 %v338
    %393 = vmatprep.subr.mxu0 0.0
    %394 = vmatpush1.msra.mxu0 %v339
    %395 = vmatprep.subr.mxu0 0.0
    %396 = vmatpush1.msra.mxu0 %v340
    %397 = vmatprep.subr.mxu0 0.0
    %398 = vmatpush1.msra.mxu0 %v341
    %399 = vmatprep.subr.mxu0 0.0
    %400 = vmatpush1.msra.mxu0 %v342
    %401 = vmatprep.subr.mxu0 0.0
    %402 = vmatpush1.msra.mxu0 %v343
    %403 = vmatprep.subr.mxu0 0.0
    %404 = vmatpush1.msra.mxu0 %v344
    %405 = vmatprep.subr.mxu0 0.0
    %406 = vmatpush1.msra.mxu0 %v345
    %407 = vmatprep.subr.mxu0 0.0
    %408 = vmatpush1.msra.mxu0 %v346
    %409 = vmatprep.subr.mxu0 0.0
    %410 = vmatpush1.msra.mxu0 %v347
    %411 = vmatprep.subr.mxu0 0.0
    %412 = vmatpush1.msra.mxu0 %v348
    %413 = vmatprep.subr.mxu0 0.0
    %414 = vmatpush1.msra.mxu0 %v349
    %415 = vmatprep.subr.mxu0 0.0
    %416 = vmatpush1.msra.mxu0 %v350
    %417 = vmatprep.subr.mxu0 0.0
    %418 = vmatpush1.msra.mxu0 %v351
    %419 = vmatprep.subr.mxu0 0.0
    %420 = vmatpush1.msra.mxu0 %v352
    %421 = vmatprep.subr.mxu0 0.0
    %422 = vmatpush1.msra.mxu0 %v353
    %423 = vmatprep.subr.mxu0 0.0
    %424 = vmatpush1.msra.mxu0 %v354
    %425 = vmatprep.subr.mxu0 0.0
    %426 = vmatpush1.msra.mxu0 %v355
    %427 = vmatprep.subr.mxu0 0.0
    %428 = vmatpush1.msra.mxu0 %v356
    %429 = vmatprep.subr.mxu0 0.0
    %430 = vmatpush1.msra.mxu0 %v357
    %431 = vmatprep.subr.mxu0 0.0
    %432 = vmatpush1.msra.mxu0 %v358
    %433 = vmatprep.subr.mxu0 0.0
    %434 = vmatpush1.msra.mxu0 %v359
    %435 = vmatprep.subr.mxu0 0.0
    %436 = vmatpush1.msra.mxu0 %v360
    %437 = vmatprep.subr.mxu0 0.0
    %438 = vmatpush1.msra.mxu0 %v361
    %439 = vmatprep.subr.mxu0 0.0
    %440 = vmatpush1.msra.mxu0 %v362
    %441 = vmatprep.subr.mxu0 0.0
    %442 = vmatpush1.msra.mxu0 %v363
    %443 = vmatprep.subr.mxu0 0.0
    %444 = vmatpush1.msra.mxu0 %v364
    %445 = vmatprep.mubr.f32.mxu0 %v331
    %446 = vmatmul.mubr.f32.gmra.mrb[0].mxu0 %v330
    %v447 = vpop.f32.mrb[0].mxu0
    %v448 = vadd.f32 0.0, %v447
    %v449 = vpop.f32.mrb[0].mxu0
    %450 = vdwg.mxu0
    %451 = vmatprep.subr.mxu0 0.0
    %452 = vmatpush1.msra.mxu0 %v365
    %453 = vmatprep.subr.mxu0 0.0
    %454 = vmatpush1.msra.mxu0 %v366
    %455 = vmatprep.subr.mxu0 0.0
    %456 = vmatpush1.msra.mxu0 %v367
    %457 = vmatprep.subr.mxu0 0.0
    %458 = vmatpush1.msra.mxu0 %v368
    %459 = vmatprep.subr.mxu0 0.0
    %460 = vmatpush1.msra.mxu0 %v369
    %461 = vmatprep.subr.mxu0 0.0
    %462 = vmatpush1.msra.mxu0 %v370
    %463 = vmatprep.subr.mxu0 0.0
    %464 = vmatpush1.msra.mxu0 %v371
    %465 = vmatprep.subr.mxu0 0.0
    %466 = vmatpush1.msra.mxu0 %v372
    %467 = vmatprep.subr.mxu0 0.0
    %468 = vmatpush1.msra.mxu0 %v373
    %469 = vmatprep.subr.mxu0 0.0
    %470 = vmatpush1.msra.mxu0 %v374
    %471 = vmatprep.subr.mxu0 0.0
    %472 = vmatpush1.msra.mxu0 %v375
    %473 = vmatprep.subr.mxu0 0.0
    %474 = vmatpush1.msra.mxu0 %v376
    %475 = vmatprep.subr.mxu0 0.0
    %476 = vmatpush1.msra.mxu0 %v377
    %477 = vmatprep.subr.mxu0 0.0
    %478 = vmatpush1.msra.mxu0 %v378
    %479 = vmatprep.subr.mxu0 0.0
    %480 = vmatpush1.msra.mxu0 %v379
    %481 = vmatprep.subr.mxu0 0.0
    %482 = vmatpush1.msra.mxu0 %v380
    %483 = vmatprep.subr.mxu0 0.0
    %484 = vmatpush1.msra.mxu0 0.0
    %485 = vmatprep.subr.mxu0 0.0
    %486 = vmatpush1.msra.mxu0 0.0
    %487 = vmatprep.subr.mxu0 0.0
    %488 = vmatpush1.msra.mxu0 0.0
    %489 = vmatprep.subr.mxu0 0.0
    %490 = vmatpush1.msra.mxu0 0.0
    %491 = vmatprep.subr.mxu0 0.0
    %492 = vmatpush1.msra.mxu0 0.0
    %493 = vmatprep.subr.mxu0 0.0
    %494 = vmatpush1.msra.mxu0 0.0
    %495 = vmatprep.subr.mxu0 0.0
    %496 = vmatpush1.msra.mxu0 0.0
    %497 = vmatprep.subr.mxu0 0.0
    %498 = vmatpush1.msra.mxu0 0.0
    %499 = vmatprep.subr.mxu0 0.0
    %500 = vmatpush1.msra.mxu0 0.0
    %501 = vmatprep.subr.mxu0 0.0
    %502 = vmatpush1.msra.mxu0 0.0
    %503 = vmatprep.subr.mxu0 0.0
    %504 = vmatpush1.msra.mxu0 0.0
    %505 = vmatprep.subr.mxu0 0.0
    %506 = vmatpush1.msra.mxu0 0.0
    %507 = vmatprep.subr.mxu0 0.0
    %508 = vmatpush1.msra.mxu0 0.0
    %509 = vmatprep.subr.mxu0 0.0
    %510 = vmatpush1.msra.mxu0 0.0
    %511 = vmatprep.subr.mxu0 0.0
    %512 = vmatpush1.msra.mxu0 0.0
    %513 = vmatprep.subr.mxu0 0.0
    %514 = vmatpush1.msra.mxu0 0.0
    %515 = vmatprep.mubr.f32.mxu0 0.0
    %516 = vmatmul.mubr.f32.gmra.mrb[0].mxu0 %v332
    %v517 = vpop.f32.mrb[0].mxu0
    %v518 = vadd.f32 %v448, %v517
    %v519 = vpop.f32.mrb[0].mxu0
    %520 = vdwg.mxu0
    %vm521 = vcmask 261120
    %522 = vst.msk [vmem:[#allocation2] sm:$0xff] %vm521, %v518
    // Predicated region
    $region10: #{tpu_custom_call.1} parent=1 // pred_check
      _
    $region11: #{tpu_custom_call.1} parent=1 // pred_check_branch
      %524 = sbr.rel (0) target = $region13
    $region12: #{tpu_custom_call.1} parent=1 // pred_region
      %s526 = ssub.s32 128, 128
      %527 = vsyncadd [#allocation3], %s526
      %s529 = sshll.u32 [#allocation2], 4
      %s530 = int_to_ptr.vmem [resolvable:$true] %s529
      %532 = dma.vmem_to_hbm [thread:$0]  %s530, 128, %s2, [#allocation3]
    $region13: #{tpu_custom_call.1} parent=1 // pred_fallthru
      _
    // Predicated region
    $region14: #{tpu_custom_call.1} parent=1 // pred_check
      _
    $region15: #{tpu_custom_call.1} parent=1 // pred_check_branch
      %534 = sbr.rel (0) target = $region17
    $region16: #{tpu_custom_call.1} parent=1 // pred_region
      %535 = dma.done [#allocation3], 128
    $region17: #{tpu_custom_call.1} parent=1 // pred_fallthru
      _
    %536 = vsyncpa [#allocation3], 1

</llo_original>
